<compile_context>
chip_gen: v5e
topology: v5e:2x2
jax: 0.10.0
libtpu: 0.0.40
codegen_flags: <defaults>
</compile_context>

<pallas_src>
import jax
import jax.numpy as jnp
from jax.experimental import pallas as pl
from jax.experimental.pallas import tpu as pltpu


_LANES = 128                 # vreg lane width
_PACK = _LANES // 32         # 4 batch rows packed per 128-lane vector row
_SUBLANES = 8                # f32 sublane granularity


def _round_up(n, m):
    return ((n + m - 1) // m) * m


def _fused_ffn_kernel(w_ref, b_ref, x_ref, o_ref):
    # w_ref: (128, 4)          block-diagonal folded weight, resident in VMEM
    # b_ref: (1, 1)            folded bias scalar, in SMEM
    # x_ref: (tile_rows, 128)  lane-dense packed input tile (4 batch rows/row)
    # o_ref: (tile_rows, 4)    outputs of the 4 packed batch rows per row
    y = jnp.dot(x_ref[...], w_ref[...], preferred_element_type=jnp.float32)
    o_ref[...] = (y + b_ref[0, 0]).astype(o_ref.dtype)


def _vmem_limit_bytes():
    """Per-generation VMEM budget: ~3/4 of physical, capped at 96 MiB.

    v5e/v6e (128 MiB physical) -> 96 MiB ; v7x (64 MiB physical) -> 48 MiB.
    """
    try:
        cap = int(pltpu.get_tpu_info().vmem_capacity_bytes)
    except Exception:  # interpret mode / query unavailable: conservative
        cap = 64 * 1024 * 1024
    return min(cap * 3 // 4, 96 * 1024 * 1024)


def basic_model_forward(x, params, *, tile_rows=None):
    """Eval-mode forward pass of BasicModel as a single Pallas TPU kernel."""
    w1, b1, w2, b2, w3, b3 = params
    f32 = jnp.float32

    # Fold the Linear chain in f32 (legal while Dropout is identity / eval).
    w_fold = (w1.astype(f32) @ w2.astype(f32) @ w3.astype(f32))          # (32, 1)
    b_fold = (b1.astype(f32) @ w2.astype(f32) @ w3.astype(f32)
              + b2.astype(f32) @ w3.astype(f32) + b3.astype(f32))        # (1, 1)

    B, D = x.shape
    assert D == 32, f"expected 32 input features, got {D}"
    x = x.astype(f32)

    # Pack 4 batch rows per 128-lane vector row (free row-major reshape).
    # Pad only to a multiple of 4 when needed -- never to the tile size.
    b_pad = _round_up(B, _PACK)
    if b_pad != B:
        x = jnp.pad(x, ((0, b_pad - B), (0, 0)))
    rows = b_pad // _PACK
    x4 = x.reshape(rows, _LANES)

    # Block-diagonal folded weight: w4[j*32 + k, j] = w_fold[k], j = 0..3.
    w4 = jnp.kron(jnp.eye(_PACK, dtype=f32), w_fold.reshape(32, 1))      # (128, 4)

    vmem_limit = _vmem_limit_bytes()
    if tile_rows is None:
        # Per grid step (double-buffered, counting lane padding of the output
        # block to 128 lanes): 2 x tile_rows*512 B (x) + 2 x tile_rows*512 B
        # (out) = 2048 B per packed row. Use ~70% of the VMEM budget.
        tile_rows = (int(vmem_limit * 0.7) // 2048) // _SUBLANES * _SUBLANES
    tile_rows = max(_SUBLANES, (int(tile_rows) // _SUBLANES) * _SUBLANES)
    tile_rows = min(tile_rows, _round_up(rows, _SUBLANES))

    grid = (pl.cdiv(rows, tile_rows),)   # ragged last tile is fine (writes masked)

    cost = pl.CostEstimate(
        flops=2 * rows * _LANES * _PACK,
        transcendentals=0,
        bytes_accessed=rows * _LANES * 4 + rows * _PACK * 4 + int(w4.size) * 4,
    )

    out = pl.pallas_call(
        _fused_ffn_kernel,
        out_shape=jax.ShapeDtypeStruct((rows, _PACK), f32),
        grid=grid,
        in_specs=[
            # folded block-diag weight: constant block -> DMA'd once, resident
            pl.BlockSpec((_LANES, _PACK), lambda i: (0, 0)),
            # folded bias scalar lives in SMEM (no VMEM tensor DMA/broadcast)
            pl.BlockSpec(memory_space=pltpu.MemorySpace.SMEM),
            # streamed lane-dense batch tile (double-buffered by the pipeline)
            pl.BlockSpec((tile_rows, _LANES), lambda i: (i, 0)),
        ],
        out_specs=pl.BlockSpec((tile_rows, _PACK), lambda i: (i, 0)),
        compiler_params=pltpu.CompilerParams(
            # embarrassingly parallel batch axis -> shared across v7x's 2 TCs
            dimension_semantics=("parallel",),
            vmem_limit_bytes=vmem_limit,
        ),
        cost_estimate=cost,
    )(w4, b_fold, x4)

    # (rows, 4) row-major is exactly batch order -> free reshape to (B, 1).
    return out.reshape(b_pad, 1)[:B]


def init_params(key):
    """Deterministic init mimicking nn.Linear's U(-1/sqrt(fan_in), +...).

    Weights are stored (in_features, out_features).
    """
    def linear(key, fan_in, fan_out):
        kw, kb = jax.random.split(key)
        bound = 1.0 / jnp.sqrt(fan_in)
        w = jax.random.uniform(kw, (fan_in, fan_out), jnp.float32, -bound, bound)
        b = jax.random.uniform(kb, (1, fan_out), jnp.float32, -bound, bound)
        return w, b

    k1, k2, k3 = jax.random.split(key, 3)
    w1, b1 = linear(k1, 32, 128)
    w2, b2 = linear(k2, 128, 32)
    w3, b3 = linear(k3, 32, 1)
    return (w1, b1, w2, b2, w3, b3)


if __name__ == "__main__":
    key = jax.random.PRNGKey(0)
    kx, kp = jax.random.split(key)

    B = 512  # small demo batch (rows = 128 packed vector rows)
    x = jax.random.normal(kx, (B, 32), dtype=jnp.float32)
    params = init_params(kp)

    # pure-JAX reference of the unfused eval-mode forward
    w1, b1, w2, b2, w3, b3 = params
    ref = ((x @ w1 + b1) @ w2 + b2) @ w3 + b3

    # auto-sized tile (single grid step at this small batch)
    out = jax.block_until_ready(basic_model_forward(x, params))
    assert out.shape == (B, 1)
    assert jnp.allclose(out, ref, atol=1e-4, rtol=1e-4), (
        float(jnp.max(jnp.abs(out - ref))))

    # small explicit tile to exercise a multi-step pipelined grid (4 steps)
    out_tiled = jax.block_until_ready(
        basic_model_forward(x, params, tile_rows=32))
    assert jnp.allclose(out_tiled, ref, atol=1e-4, rtol=1e-4), (
        float(jnp.max(jnp.abs(out_tiled - ref))))

    print("KERNEL_OK")
</pallas_src>

<mosaic_0001>
module attributes {stable_mosaic.version = 11 : i64} {
  func.func @_fused_ffn_kernel(%arg0: i32, %arg1: memref<128x4xf32, #tpu.memory_space<vmem>>, %arg2: memref<1x1xf32, #tpu.memory_space<smem>>, %arg3: memref<128x128xf32, #tpu.memory_space<vmem>>, %arg4: memref<128x4xf32, #tpu.memory_space<vmem>>) attributes {dimension_semantics = [#tpu.dimension_semantics<parallel>], iteration_bounds = array<i64: 1>, scalar_prefetch = 0 : i64, scratch_operands = 0 : i64, tpu.core_type = #tpu.core_type<tc>, window_params = [{pipeline_mode = #tpu.pipeline_mode<synchronous>, transform_indices = @transform_0, window_bounds = array<i64: 128, 4>}, {transform_indices = @transform_1, window_bounds = array<i64: 1, 1>}, {transform_indices = @transform_2, window_bounds = array<i64: 128, 128>}, {transform_indices = @transform_3, window_bounds = array<i64: 128, 4>}]} {
    %c0 = arith.constant 0 : index
    %c0_0 = arith.constant 0 : index
    %0 = vector.load %arg3[%c0, %c0_0] : memref<128x128xf32, #tpu.memory_space<vmem>>, vector<128x128xf32>
    %c0_1 = arith.constant 0 : index
    %c0_2 = arith.constant 0 : index
    %1 = vector.load %arg1[%c0_1, %c0_2] : memref<128x4xf32, #tpu.memory_space<vmem>>, vector<128x4xf32>
    %cst = arith.constant dense<0.000000e+00> : vector<128x4xf32>
    %2 = tpu.matmul %0, %1, %cst {dimension_numbers = #tpu.dot_dimension_numbers<[1], [0], [0], [1], [0, 0, 1, 1], [], []>} : vector<128x128xf32>, vector<128x4xf32>, vector<128x4xf32> -> vector<128x4xf32>
    %c0_3 = arith.constant 0 : index
    %c0_4 = arith.constant 0 : index
    %3 = memref.load %arg2[%c0_3, %c0_4] : memref<1x1xf32, #tpu.memory_space<smem>>
    %4 = vector.broadcast %3 : f32 to vector<128x4xf32>
    %5 = arith.addf %2, %4 : vector<128x4xf32>
    %c0_5 = arith.constant 0 : index
    %c0_6 = arith.constant 0 : index
    %6 = vector.load %arg4[%c0_5, %c0_6] : memref<128x4xf32, #tpu.memory_space<vmem>>, vector<128x4xf32>
    tpu.vector_store %arg4[%c0_5, %c0_6], %5 {strides = array<i32>} : memref<128x4xf32, #tpu.memory_space<vmem>>, vector<128x4xf32>,
    return
  }
  func.func @transform_0(%arg0: i32) -> (i32, i32) {
    %c0_i32 = arith.constant 0 : i32
    %c0_i32_0 = arith.constant 0 : i32
    %c0_i32_1 = arith.constant 0 : i32
    return %c0_i32, %c0_i32_0 : i32, i32
  }
  func.func @transform_1(%arg0: i32) -> (i32, i32) {
    %c0_i32 = arith.constant 0 : i32
    %c0_i32_0 = arith.constant 0 : i32
    %c0_i32_1 = arith.constant 0 : i32
    return %c0_i32, %c0_i32_0 : i32, i32
  }
  func.func @transform_2(%arg0: i32) -> (i32, i32) {
    %c0_i32 = arith.constant 0 : i32
    %c0_i32_0 = arith.constant 0 : i32
    return %arg0, %c0_i32 : i32, i32
  }
  func.func @transform_3(%arg0: i32) -> (i32, i32) {
    %c0_i32 = arith.constant 0 : i32
    %c0_i32_0 = arith.constant 0 : i32
    return %arg0, %c0_i32 : i32, i32
  }
}

</mosaic_0001>

<llo_original>
// kernel: tpu_custom_call.1
$region0: #{tpu_custom_call.1}
  #allocation0 [shape = 'u32[]', space=smem, size = 0x4, offset = 0x4, fixed_abs, tag = 'smem constant byte address 0x4 - core index']
  #allocation1 [shape = 'u32[72,128]{1,0:T(1,128)}', space=vmem, size = 0x9000, scoped, tag = 'internal scratch']
  #allocation2 [shape = 'f32[1,1]{1,0:T(1,128)S(6)}', space=smem, size = 0x200, scoped, tag = 'scoped memory for tpu_custom_call.1']
  %s0 = inlined_call_operand.vmem [shape: f32[128,4], index: 0, kind: input, shape index: {}]
  %s1 = inlined_call_operand.<no memory space> [shape: f32[1,1], index: 1, kind: input, shape index: {}]
  %s2 = inlined_call_operand.vmem [shape: f32[128,128], index: 2, kind: input, shape index: {}]
  %s3 = inlined_call_operand.vmem [shape: f32[128,4], index: 3, kind: output, shape index: {}]
  %s4 = sld [smem:[#allocation0]]
  $region22: #{tpu_custom_call.1} parent=0
    _
  %s6 = ssub.s32 1, %s4
  %s7 = scalar_select 0, %s6, %s4
  %8 = sst [smem:[#allocation2]] %s1
  // Predicated region
  $region2: #{tpu_custom_call.1} parent=0 // pred_check
    _
  $region3: #{tpu_custom_call.1} parent=0 // pred_check_branch
    %10 = sbr.rel (0) target = $region5
  $region4: #{tpu_custom_call.1} parent=0 // pred_region
    _
  $region5: #{tpu_custom_call.1} parent=0 // pred_fallthru
    _
  // Predicated region
  $region6: #{tpu_custom_call.1} parent=0 // pred_check
    _
  $region7: #{tpu_custom_call.1} parent=0 // pred_check_branch
    %12 = sbr.rel (0) target = $region9
  $region8: #{tpu_custom_call.1} parent=0 // pred_region
    _
  $region9: #{tpu_custom_call.1} parent=0 // pred_fallthru
    _
  // Predicated region
  $region10: #{tpu_custom_call.1} parent=0 // pred_check
    _
  $region11: #{tpu_custom_call.1} parent=0 // pred_check_branch
    %14 = sbr.rel (0) target = $region13
  $region12: #{tpu_custom_call.1} parent=0 // pred_region
    _
  $region13: #{tpu_custom_call.1} parent=0 // pred_fallthru
    _
  %v15 = vld [vmem:[%s2] sm:$0xff]
  %v16 = vld [vmem:[%s2 + $0x8] sm:$0xff]
  %v17 = vld [vmem:[%s2 + $0x10] sm:$0xff]
  %v18 = vld [vmem:[%s2 + $0x18] sm:$0xff]
  %v19 = vld [vmem:[%s2 + $0x20] sm:$0xff]
  %v20 = vld [vmem:[%s2 + $0x28] sm:$0xff]
  %v21 = vld [vmem:[%s2 + $0x30] sm:$0xff]
  %v22 = vld [vmem:[%s2 + $0x38] sm:$0xff]
  %v23 = vld [vmem:[%s2 + $0x40] sm:$0xff]
  %v24 = vld [vmem:[%s2 + $0x48] sm:$0xff]
  %v25 = vld [vmem:[%s2 + $0x50] sm:$0xff]
  %v26 = vld [vmem:[%s2 + $0x58] sm:$0xff]
  %v27 = vld [vmem:[%s2 + $0x60] sm:$0xff]
  %v28 = vld [vmem:[%s2 + $0x68] sm:$0xff]
  %v29 = vld [vmem:[%s2 + $0x70] sm:$0xff]
  %v30 = vld [vmem:[%s2 + $0x78] sm:$0xff]
  %v31 = vld [vmem:[%s0] sm:$0xff]
  %v32 = vld [vmem:[%s0 + $0x8] sm:$0xff]
  %v33 = vld [vmem:[%s0 + $0x10] sm:$0xff]
  %v34 = vld [vmem:[%s0 + $0x18] sm:$0xff]
  %v35 = vld [vmem:[%s0 + $0x20] sm:$0xff]
  %v36 = vld [vmem:[%s0 + $0x28] sm:$0xff]
  %v37 = vld [vmem:[%s0 + $0x30] sm:$0xff]
  %v38 = vld [vmem:[%s0 + $0x38] sm:$0xff]
  %v39 = vld [vmem:[%s0 + $0x40] sm:$0xff]
  %v40 = vld [vmem:[%s0 + $0x48] sm:$0xff]
  %v41 = vld [vmem:[%s0 + $0x50] sm:$0xff]
  %v42 = vld [vmem:[%s0 + $0x58] sm:$0xff]
  %v43 = vld [vmem:[%s0 + $0x60] sm:$0xff]
  %v44 = vld [vmem:[%s0 + $0x68] sm:$0xff]
  %v45 = vld [vmem:[%s0 + $0x70] sm:$0xff]
  %v46 = vld [vmem:[%s0 + $0x78] sm:$0xff]
  %s47 = sld [smem:[#allocation2]]
  %v48 = vstv %s47
  %49 = vmatpush.msra.mxu0 %v46
  %50 = vmatpush.msra.mxu0 %v45
  %51 = vmatpush.msra.mxu0 %v44
  %52 = vmatpush.msra.mxu0 %v43
  %53 = vmatpush.msra.mxu0 %v42
  %54 = vmatpush.msra.mxu0 %v41
  %55 = vmatpush.msra.mxu0 %v40
  %56 = vmatpush.msra.mxu0 %v39
  %57 = vmatpush.msra.mxu0 %v38
  %58 = vmatpush.msra.mxu0 %v37
  %59 = vmatpush.msra.mxu0 %v36
  %60 = vmatpush.msra.mxu0 %v35
  %61 = vmatpush.msra.mxu0 %v34
  %62 = vmatpush.msra.mxu0 %v33
  %63 = vmatpush.msra.mxu0 %v32
  %64 = vmatpush.msra.mxu0 %v31
  %65 = vmatmul.f32.gmra.mxu0 %v15
  %v66 = vpop.f32.mrf.mxu0
  %v67 = vadd.f32 %v48, %v66
  %68 = vmatmul.f32.gmra.mxu0 %v16
  %v69 = vpop.f32.mrf.mxu0
  %v70 = vadd.f32 %v48, %v69
  %71 = vmatmul.f32.gmra.mxu0 %v17
  %v72 = vpop.f32.mrf.mxu0
  %v73 = vadd.f32 %v48, %v72
  %74 = vmatmul.f32.gmra.mxu0 %v18
  %v75 = vpop.f32.mrf.mxu0
  %v76 = vadd.f32 %v48, %v75
  %77 = vmatmul.f32.gmra.mxu0 %v19
  %v78 = vpop.f32.mrf.mxu0
  %v79 = vadd.f32 %v48, %v78
  %80 = vmatmul.f32.gmra.mxu0 %v20
  %v81 = vpop.f32.mrf.mxu0
  %v82 = vadd.f32 %v48, %v81
  %83 = vmatmul.f32.gmra.mxu0 %v21
  %v84 = vpop.f32.mrf.mxu0
  %v85 = vadd.f32 %v48, %v84
  %86 = vmatmul.f32.gmra.mxu0 %v22
  %v87 = vpop.f32.mrf.mxu0
  %v88 = vadd.f32 %v48, %v87
  %89 = vmatmul.f32.gmra.mxu0 %v23
  %v90 = vpop.f32.mrf.mxu0
  %v91 = vadd.f32 %v48, %v90
  %92 = vmatmul.f32.gmra.mxu0 %v24
  %v93 = vpop.f32.mrf.mxu0
  %v94 = vadd.f32 %v48, %v93
  %95 = vmatmul.f32.gmra.mxu0 %v25
  %v96 = vpop.f32.mrf.mxu0
  %v97 = vadd.f32 %v48, %v96
  %98 = vmatmul.f32.gmra.mxu0 %v26
  %v99 = vpop.f32.mrf.mxu0
  %v100 = vadd.f32 %v48, %v99
  %101 = vmatmul.f32.gmra.mxu0 %v27
  %v102 = vpop.f32.mrf.mxu0
  %v103 = vadd.f32 %v48, %v102
  %104 = vmatmul.f32.gmra.mxu0 %v28
  %v105 = vpop.f32.mrf.mxu0
  %v106 = vadd.f32 %v48, %v105
  %107 = vmatmul.f32.gmra.mxu0 %v29
  %v108 = vpop.f32.mrf.mxu0
  %v109 = vadd.f32 %v48, %v108
  %110 = vmatmul.f32.gmra.mxu0 %v30
  %v111 = vpop.f32.mrf.mxu0
  %v112 = vadd.f32 %v48, %v111
  %113 = vdwg.mxu0
  %vm114 = vcmask 31744
  %115 = vst.msk [vmem:[%s3] sm:$0xff] %vm114, %v67
  %116 = vst.msk [vmem:[%s3 + $0x8] sm:$0xff] %vm114, %v70
  %117 = vst.msk [vmem:[%s3 + $0x10] sm:$0xff] %vm114, %v73
  %118 = vst.msk [vmem:[%s3 + $0x18] sm:$0xff] %vm114, %v76
  %119 = vst.msk [vmem:[%s3 + $0x20] sm:$0xff] %vm114, %v79
  %120 = vst.msk [vmem:[%s3 + $0x28] sm:$0xff] %vm114, %v82
  %121 = vst.msk [vmem:[%s3 + $0x30] sm:$0xff] %vm114, %v85
  %122 = vst.msk [vmem:[%s3 + $0x38] sm:$0xff] %vm114, %v88
  %123 = vst.msk [vmem:[%s3 + $0x40] sm:$0xff] %vm114, %v91
  %124 = vst.msk [vmem:[%s3 + $0x48] sm:$0xff] %vm114, %v94
  %125 = vst.msk [vmem:[%s3 + $0x50] sm:$0xff] %vm114, %v97
  %126 = vst.msk [vmem:[%s3 + $0x58] sm:$0xff] %vm114, %v100
  %127 = vst.msk [vmem:[%s3 + $0x60] sm:$0xff] %vm114, %v103
  %128 = vst.msk [vmem:[%s3 + $0x68] sm:$0xff] %vm114, %v106
  %129 = vst.msk [vmem:[%s3 + $0x70] sm:$0xff] %vm114, %v109
  %130 = vst.msk [vmem:[%s3 + $0x78] sm:$0xff] %vm114, %v112
  // Predicated region
  $region14: #{tpu_custom_call.1} parent=0 // pred_check
    _
  $region15: #{tpu_custom_call.1} parent=0 // pred_check_branch
    %132 = sbr.rel (0) target = $region17
  $region16: #{tpu_custom_call.1} parent=0 // pred_region
    _
  $region17: #{tpu_custom_call.1} parent=0 // pred_fallthru
    _
  // Predicated region
  $region18: #{tpu_custom_call.1} parent=0 // pred_check
    _
  $region19: #{tpu_custom_call.1} parent=0 // pred_check_branch
    %134 = sbr.rel (0) target = $region21
  $region20: #{tpu_custom_call.1} parent=0 // pred_region
    _
  $region21: #{tpu_custom_call.1} parent=0 // pred_fallthru
    _

</llo_original>
